<compile_context>
chip_gen: v7x
topology: tpu7x:2x2x1
jax: 0.10.0
libtpu: 0.0.40
codegen_flags: <defaults>
</compile_context>

<pallas_src>
import jax
import jax.numpy as jnp
from jax.experimental import pallas as pl
from jax.experimental.pallas import tpu as pltpu


_SQRT_2_OVER_PI = 0.7978845608028654
_GELU_C2 = _SQRT_2_OVER_PI * 0.044715  # 0.035677408136300125


def _gelu_tanh(x):
    # torch.nn.functional.gelu(..., approximate='tanh') with the sqrt(2/pi)
    # factor folded into the polynomial: inner = x*(c1 + c2*x*x).
    c1 = jnp.asarray(_SQRT_2_OVER_PI, x.dtype)
    c2 = jnp.asarray(_GELU_C2, x.dtype)
    return 0.5 * x * (1.0 + jnp.tanh(x * (c1 + c2 * x * x)))


def _make_resident_kernel(gelu_dtype):
    """Weights fully resident in VMEM; grid is 1-D over row tiles."""

    def kernel(x_ref, w1_ref, b1_ref, w2_ref, b2_ref, o_ref):
        # fc1: bf16 MXU matmul, f32 accumulation.
        h = jnp.dot(x_ref[...], w1_ref[...], preferred_element_type=jnp.float32)
        h = h + b1_ref[...].astype(jnp.float32)
        # fc1 GELU over the (tm, I) region: bf16 on v6e/v7x (native bf16
        # VPU/EUP -> halves the binding slot pressure), f32 on v5e.
        h = _gelu_tanh(h.astype(gelu_dtype)).astype(w2_ref.dtype)
        # fc2 + the spec's second GELU (kept f32: only a (tm, H) region).
        y = jnp.dot(h, w2_ref[...], preferred_element_type=jnp.float32)
        y = y + b2_ref[...].astype(jnp.float32)
        o_ref[...] = _gelu_tanh(y).astype(o_ref.dtype)

    return kernel


def _make_i_tiled_kernel(gelu_dtype):
    """Fallback: intermediate dim I tiled; fc2 accumulated in f32 scratch."""

    def kernel(x_ref, w1_ref, b1_ref, w2_ref, b2_ref, o_ref, acc_ref):
        j = pl.program_id(1)

        @pl.when(j == 0)
        def _init():
            acc_ref[...] = jnp.zeros_like(acc_ref)

        h = jnp.dot(x_ref[...], w1_ref[...], preferred_element_type=jnp.float32)
        h = h + b1_ref[...].astype(jnp.float32)
        h = _gelu_tanh(h.astype(gelu_dtype)).astype(w2_ref.dtype)
        acc_ref[...] += jnp.dot(h, w2_ref[...], preferred_element_type=jnp.float32)

        @pl.when(j == pl.num_programs(1) - 1)
        def _finalize():
            y = acc_ref[...] + b2_ref[...].astype(jnp.float32)
            o_ref[...] = _gelu_tanh(y).astype(o_ref.dtype)

    return kernel


def _round_up(x, m):
    return ((x + m - 1) // m) * m


def _cdiv(a, b):
    return -(-a // b)


def _device_kind():
    try:
        return jax.devices()[0].device_kind.lower()
    except Exception:
        return ""


def _vmem_capacity_bytes(default):
    try:
        return int(pltpu.get_tpu_info().vmem_capacity_bytes)
    except Exception:
        return default


def siglip_mlp(hidden_states, w1, b1, w2, b2, *, tm=None, i_tile=None):
    """SiglipMLP forward: gelu_tanh(gelu_tanh(x @ w1 + b1) @ w2 + b2).

    hidden_states: (B, S, H).  Weights are stored pre-transposed as (in, out):
    w1: (H, I), b1: (I,), w2: (I, H), b2: (H,).
    """
    B, S, H = hidden_states.shape
    I = w1.shape[1]
    M = B * S
    out_dtype = hidden_states.dtype

    kind = _device_kind()
    is_v5 = "v5" in kind
    is_v7 = "v7" in kind
    num_tc = 2 if is_v7 else 1
    vmem_cap = _vmem_capacity_bytes((64 << 20) if is_v7 else (128 << 20))
    vmem_frac = 0.8 if vmem_cap <= (64 << 20) else 0.9
    budget = vmem_frac * vmem_cap

    # --- dtypes: never feed f32 tiles to the MXU ---------------------------
    def mxu_dtype(dt):
        dt = jnp.dtype(dt)
        return dt if dt.itemsize < 4 else jnp.dtype(jnp.bfloat16)

    x_dt = mxu_dtype(hidden_states.dtype)
    w_dt = mxu_dtype(w1.dtype)
    gelu_dtype = jnp.float32 if is_v5 else jnp.bfloat16  # v5e: no bf16 VPU/EUP

    x2d = hidden_states.reshape(M, H).astype(x_dt)
    w1c = w1.astype(w_dt)
    w2c = w2.astype(w_dt)
    b1_2d = b1.reshape(1, I).astype(jnp.float32)
    b2_2d = b2.reshape(1, H).astype(jnp.float32)

    w_isz = jnp.dtype(w_dt).itemsize
    x_isz = jnp.dtype(x_dt).itemsize
    o_isz = jnp.dtype(out_dtype).itemsize
    g_isz = jnp.dtype(gelu_dtype).itemsize

    # --- row tile -----------------------------------------------------------
    sub = max(8, 32 // x_isz)  # bf16 needs 16-sublane packing
    if tm is None:
        # v7x has only 64 MiB VMEM per TensorCore: shrink the (tm, I)
        # intermediate when I is large.  512 on v5e/v6e.
        tm = 256 if (is_v7 and I >= 2048) else 512
    tm_eff = max(sub, min(_round_up(tm, sub), _round_up(M, sub)))
    # On v7x (2 TensorCores) make the tile count a multiple of 2 when possible
    # so the "parallel" M axis splits evenly across both cores.
    if num_tc > 1 and M > sub * num_tc:
        n = _cdiv(M, tm_eff)
        if n % num_tc != 0:
            n = _round_up(n, num_tc)
            tm_eff = max(sub, min(tm_eff, _round_up(_cdiv(M, n), sub)))

    # --- VMEM footprint of the fully-resident path --------------------------
    est_resident = (
        (H * I + I * H) * w_isz + (I + H) * 4   # single-buffered weights + biases
        + 2 * tm_eff * H * x_isz                 # x tile (double-buffered)
        + 2 * tm_eff * H * o_isz                 # out tile (double-buffered)
        + tm_eff * I * 4                         # fc1 f32 dot result
        + tm_eff * I * g_isz                     # fc1 GELU intermediate
        + tm_eff * H * 4                         # fc2 f32 result
    )
    use_tiled = (i_tile is not None) or (est_resident * 1.2 + (2 << 20) > budget)

    if not use_tiled:
        grid = (_cdiv(M, tm_eff),)
        kernel = _make_resident_kernel(gelu_dtype)
        vmem_limit = int(min(max(est_resident * 1.2 + (2 << 20), 32 << 20), budget))

        def run(single_buffer_weights):
            if single_buffer_weights:
                # Grid-invariant operands (constant index_map -> fetched once):
                # one buffer is enough; saves (H*I + I*H)*itemsize of dead VMEM.
                def resident(shape):
                    return pl.BlockSpec(shape, lambda i: (0, 0),
                                        pipeline_mode=pl.Buffered(1))
            else:
                def resident(shape):
                    return pl.BlockSpec(shape, lambda i: (0, 0))

            return pl.pallas_call(
                kernel,
                out_shape=jax.ShapeDtypeStruct((M, H), out_dtype),
                grid_spec=pltpu.PrefetchScalarGridSpec(
                    num_scalar_prefetch=0,
                    grid=grid,
                    in_specs=[
                        pl.BlockSpec((tm_eff, H), lambda i: (i, 0)),  # x rows (2-deep)
                        resident((H, I)),                             # fc1 weight
                        resident((1, I)),                             # fc1 bias
                        resident((I, H)),                             # fc2 weight
                        resident((1, H)),                             # fc2 bias
                    ],
                    out_specs=pl.BlockSpec((tm_eff, H), lambda i: (i, 0)),
                ),
                compiler_params=pltpu.CompilerParams(
                    dimension_semantics=("parallel",),  # shards M over v7x's 2 TCs
                    vmem_limit_bytes=vmem_limit,
                ),
            )(x2d, w1c, b1_2d, w2c, b2_2d)

        try:
            out2d = run(True)
        except Exception:
            # pipeline_mode / Buffered(1) unsupported -> default double buffering.
            out2d = run(False)
        return out2d.reshape(B, S, H)

    # --- I-tiled fallback: VMEM bounded independently of I -------------------
    ti = i_tile if i_tile is not None else 512
    ti = max(128, _round_up(min(ti, max(I, 128)), 128))
    i_pad = _round_up(I, ti)
    if i_pad != I:
        # Explicit zero padding keeps the fc2 accumulation exact for ragged I
        # (gelu(0)=0 and the padded w2 rows are zero).
        w1c = jnp.pad(w1c, ((0, 0), (0, i_pad - I)))
        b1_2d = jnp.pad(b1_2d, ((0, 0), (0, i_pad - I)))
        w2c = jnp.pad(w2c, ((0, i_pad - I), (0, 0)))

    grid = (_cdiv(M, tm_eff), i_pad // ti)
    kernel = _make_i_tiled_kernel(gelu_dtype)
    est_tiled = (
        2 * (H * ti + ti * H) * w_isz + 2 * (ti + H) * 4  # streamed weight/bias blocks
        + 2 * tm_eff * H * (x_isz + o_isz)                 # x / out tiles
        + tm_eff * ti * (4 + g_isz)                        # fc1 f32 result + GELU
        + 2 * tm_eff * H * 4                               # acc scratch + fc2 f32 result
    )
    vmem_limit = int(min(max(est_tiled * 1.3 + (2 << 20), 32 << 20), budget))

    out2d = pl.pallas_call(
        kernel,
        out_shape=jax.ShapeDtypeStruct((M, H), out_dtype),
        grid_spec=pltpu.PrefetchScalarGridSpec(
            num_scalar_prefetch=0,
            grid=grid,
            in_specs=[
                pl.BlockSpec((tm_eff, H), lambda i, j: (i, 0)),  # x: resident across j
                pl.BlockSpec((H, ti), lambda i, j: (0, j)),      # fc1 weight column block
                pl.BlockSpec((1, ti), lambda i, j: (0, j)),      # fc1 bias block
                pl.BlockSpec((ti, H), lambda i, j: (j, 0)),      # fc2 weight row block
                pl.BlockSpec((1, H), lambda i, j: (0, 0)),       # fc2 bias
            ],
            out_specs=pl.BlockSpec((tm_eff, H), lambda i, j: (i, 0)),
            scratch_shapes=[pltpu.VMEM((tm_eff, H), jnp.float32)],
        ),
        compiler_params=pltpu.CompilerParams(
            dimension_semantics=("parallel", "arbitrary"),
            vmem_limit_bytes=vmem_limit,
        ),
    )(x2d, w1c, b1_2d, w2c, b2_2d)
    return out2d.reshape(B, S, H)


def _reference(hidden_states, w1, b1, w2, b2):
    x = hidden_states.astype(jnp.float32)
    h = _gelu_tanh(x @ w1.astype(jnp.float32) + b1.astype(jnp.float32))
    y = _gelu_tanh(h @ w2.astype(jnp.float32) + b2.astype(jnp.float32))
    return y.astype(hidden_states.dtype)


if __name__ == "__main__":
    key = jax.random.PRNGKey(0)

    # 1) Small config consistent with the module: hidden_size=32, intermediate_size=64.
    batch, seq, hidden, inter = 2, 8, 32, 64
    kx, k1, k2, k3, k4, key = jax.random.split(key, 6)
    x = jax.random.normal(kx, (batch, seq, hidden), dtype=jnp.float32)
    # PyTorch Linear stores weight as (out, in); we keep the (in, out) transpose
    # so the kernel computes x @ W + b.
    w1 = jax.random.normal(k1, (hidden, inter), dtype=jnp.float32) * 0.05
    b1 = jax.random.normal(k2, (inter,), dtype=jnp.float32) * 0.05
    w2 = jax.random.normal(k3, (inter, hidden), dtype=jnp.float32) * 0.05
    b2 = jax.random.normal(k4, (hidden,), dtype=jnp.float32) * 0.05

    out = jax.block_until_ready(siglip_mlp(x, w1, b1, w2, b2))
    ref = _reference(x, w1, b1, w2, b2)
    assert out.shape == (batch, seq, hidden)
    # bf16 MXU / bf16 fc1-GELU path -> bf16-appropriate tolerance.
    assert jnp.allclose(out, ref, atol=1e-2, rtol=1e-2), "resident path mismatch"

    # 2) Exercise the I-tiled fallback (auto-selected for huge intermediates /
    #    f32 checkpoints on v7x); forced here via i_tile to verify it.
    inter2 = 256
    k1, k2, k3, k4, key = jax.random.split(key, 5)
    w1b = jax.random.normal(k1, (hidden, inter2), dtype=jnp.float32) * 0.05
    b1b = jax.random.normal(k2, (inter2,), dtype=jnp.float32) * 0.05
    w2b = jax.random.normal(k3, (inter2, hidden), dtype=jnp.float32) * 0.05
    b2b = jax.random.normal(k4, (hidden,), dtype=jnp.float32) * 0.05
    out2 = jax.block_until_ready(siglip_mlp(x, w1b, b1b, w2b, b2b, i_tile=128))
    ref2 = _reference(x, w1b, b1b, w2b, b2b)
    assert out2.shape == (batch, seq, hidden)
    assert jnp.allclose(out2, ref2, atol=1e-2, rtol=1e-2), "I-tiled path mismatch"

    print("KERNEL_OK")
</pallas_src>

<mosaic_0001>
module attributes {stable_mosaic.version = 11 : i64} {
  func.func @kernel(%arg0: i32, %arg1: memref<16x32xbf16, #tpu.memory_space<vmem>>, %arg2: memref<32x64xbf16, #tpu.memory_space<vmem>>, %arg3: memref<1x64xf32, #tpu.memory_space<vmem>>, %arg4: memref<64x32xbf16, #tpu.memory_space<vmem>>, %arg5: memref<1x32xf32, #tpu.memory_space<vmem>>, %arg6: memref<16x32xf32, #tpu.memory_space<vmem>>) attributes {dimension_semantics = [#tpu.dimension_semantics<parallel>], iteration_bounds = array<i64: 1>, scalar_prefetch = 0 : i64, scratch_operands = 0 : i64, tpu.core_type = #tpu.core_type<tc>, window_params = [{transform_indices = @transform_0, window_bounds = array<i64: 16, 32>}, {pipeline_mode = #tpu.pipeline_mode<synchronous>, transform_indices = @transform_1, window_bounds = array<i64: 32, 64>}, {pipeline_mode = #tpu.pipeline_mode<synchronous>, transform_indices = @transform_2, window_bounds = array<i64: 1, 64>}, {pipeline_mode = #tpu.pipeline_mode<synchronous>, transform_indices = @transform_3, window_bounds = array<i64: 64, 32>}, {pipeline_mode = #tpu.pipeline_mode<synchronous>, transform_indices = @transform_4, window_bounds = array<i64: 1, 32>}, {transform_indices = @transform_5, window_bounds = array<i64: 16, 32>}]} {
    %c0 = arith.constant 0 : index
    %c0_0 = arith.constant 0 : index
    %0 = vector.load %arg1[%c0, %c0_0] : memref<16x32xbf16, #tpu.memory_space<vmem>>, vector<16x32xbf16>
    %c0_1 = arith.constant 0 : index
    %c0_2 = arith.constant 0 : index
    %1 = vector.load %arg2[%c0_1, %c0_2] : memref<32x64xbf16, #tpu.memory_space<vmem>>, vector<32x64xbf16>
    %cst = arith.constant dense<0.000000e+00> : vector<16x64xf32>
    %2 = tpu.matmul %0, %1, %cst {dimension_numbers = #tpu.dot_dimension_numbers<[1], [0], [0], [1], [0, 0, 1, 1], [], []>} : vector<16x32xbf16>, vector<32x64xbf16>, vector<16x64xf32> -> vector<16x64xf32>
    %c0_3 = arith.constant 0 : index
    %c0_4 = arith.constant 0 : index
    %3 = vector.load %arg3[%c0_3, %c0_4] : memref<1x64xf32, #tpu.memory_space<vmem>>, vector<1x64xf32>
    %4 = vector.broadcast %3 : vector<1x64xf32> to vector<16x64xf32>
    %5 = arith.addf %2, %4 : vector<16x64xf32>
    %6 = arith.truncf %5 : vector<16x64xf32> to vector<16x64xbf16>
    %cst_5 = arith.constant 5.000000e-01 : bf16
    %7 = vector.broadcast %cst_5 : bf16 to vector<16x64xbf16>
    %8 = arith.mulf %7, %6 : vector<16x64xbf16>
    %cst_6 = arith.constant 3.564450e-02 : bf16
    %9 = vector.broadcast %cst_6 : bf16 to vector<16x64xbf16>
    %10 = arith.mulf %9, %6 : vector<16x64xbf16>
    %11 = arith.mulf %10, %6 : vector<16x64xbf16>
    %cst_7 = arith.constant 7.968750e-01 : bf16
    %12 = vector.broadcast %cst_7 : bf16 to vector<16x64xbf16>
    %13 = arith.addf %12, %11 : vector<16x64xbf16>
    %14 = arith.mulf %6, %13 : vector<16x64xbf16>
    %15 = math.tanh %14 : vector<16x64xbf16>
    %cst_8 = arith.constant 1.000000e+00 : bf16
    %16 = vector.broadcast %cst_8 : bf16 to vector<16x64xbf16>
    %17 = arith.addf %16, %15 : vector<16x64xbf16>
    %18 = arith.mulf %8, %17 : vector<16x64xbf16>
    %c0_9 = arith.constant 0 : index
    %c0_10 = arith.constant 0 : index
    %19 = vector.load %arg4[%c0_9, %c0_10] : memref<64x32xbf16, #tpu.memory_space<vmem>>, vector<64x32xbf16>
    %cst_11 = arith.constant dense<0.000000e+00> : vector<16x32xf32>
    %20 = tpu.matmul %18, %19, %cst_11 {dimension_numbers = #tpu.dot_dimension_numbers<[1], [0], [0], [1], [0, 0, 1, 1], [], []>} : vector<16x64xbf16>, vector<64x32xbf16>, vector<16x32xf32> -> vector<16x32xf32>
    %c0_12 = arith.constant 0 : index
    %c0_13 = arith.constant 0 : index
    %21 = vector.load %arg5[%c0_12, %c0_13] : memref<1x32xf32, #tpu.memory_space<vmem>>, vector<1x32xf32>
    %22 = vector.broadcast %21 : vector<1x32xf32> to vector<16x32xf32>
    %23 = arith.addf %20, %22 : vector<16x32xf32>
    %cst_14 = arith.constant 5.000000e-01 : f32
    %24 = vector.broadcast %cst_14 : f32 to vector<16x32xf32>
    %25 = arith.mulf %24, %23 : vector<16x32xf32>
    %cst_15 = arith.constant 0.0356774069 : f32
    %26 = vector.broadcast %cst_15 : f32 to vector<16x32xf32>
    %27 = arith.mulf %26, %23 : vector<16x32xf32>
    %28 = arith.mulf %27, %23 : vector<16x32xf32>
    %cst_16 = arith.constant 0.797884583 : f32
    %29 = vector.broadcast %cst_16 : f32 to vector<16x32xf32>
    %30 = arith.addf %29, %28 : vector<16x32xf32>
    %31 = arith.mulf %23, %30 : vector<16x32xf32>
    %32 = math.tanh %31 : vector<16x32xf32>
    %cst_17 = arith.constant 1.000000e+00 : f32
    %33 = vector.broadcast %cst_17 : f32 to vector<16x32xf32>
    %34 = arith.addf %33, %32 : vector<16x32xf32>
    %35 = arith.mulf %25, %34 : vector<16x32xf32>
    %c0_18 = arith.constant 0 : index
    %c0_19 = arith.constant 0 : index
    %36 = vector.load %arg6[%c0_18, %c0_19] : memref<16x32xf32, #tpu.memory_space<vmem>>, vector<16x32xf32>
    tpu.vector_store %arg6[%c0_18, %c0_19], %35 {strides = array<i32>} : memref<16x32xf32, #tpu.memory_space<vmem>>, vector<16x32xf32>,
    return
  }
  func.func @transform_0(%arg0: i32) -> (i32, i32) {
    %c0_i32 = arith.constant 0 : i32
    %c0_i32_0 = arith.constant 0 : i32
    return %arg0, %c0_i32 : i32, i32
  }
  func.func @transform_1(%arg0: i32) -> (i32, i32) {
    %c0_i32 = arith.constant 0 : i32
    %c0_i32_0 = arith.constant 0 : i32
    %c0_i32_1 = arith.constant 0 : i32
    return %c0_i32, %c0_i32_0 : i32, i32
  }
  func.func @transform_2(%arg0: i32) -> (i32, i32) {
    %c0_i32 = arith.constant 0 : i32
    %c0_i32_0 = arith.constant 0 : i32
    %c0_i32_1 = arith.constant 0 : i32
    return %c0_i32, %c0_i32_0 : i32, i32
  }
  func.func @transform_3(%arg0: i32) -> (i32, i32) {
    %c0_i32 = arith.constant 0 : i32
    %c0_i32_0 = arith.constant 0 : i32
    %c0_i32_1 = arith.constant 0 : i32
    return %c0_i32, %c0_i32_0 : i32, i32
  }
  func.func @transform_4(%arg0: i32) -> (i32, i32) {
    %c0_i32 = arith.constant 0 : i32
    %c0_i32_0 = arith.constant 0 : i32
    %c0_i32_1 = arith.constant 0 : i32
    return %c0_i32, %c0_i32_0 : i32, i32
  }
  func.func @transform_5(%arg0: i32) -> (i32, i32) {
    %c0_i32 = arith.constant 0 : i32
    %c0_i32_0 = arith.constant 0 : i32
    return %arg0, %c0_i32 : i32, i32
  }
}

module attributes {stable_mosaic.version = 11 : i64} {
  func.func @kernel(%arg0: i32, %arg1: memref<16x32xbf16, #tpu.memory_space<vmem>>, %arg2: memref<32x64xbf16, #tpu.memory_space<vmem>>, %arg3: memref<1x64xf32, #tpu.memory_space<vmem>>, %arg4: memref<64x32xbf16, #tpu.memory_space<vmem>>, %arg5: memref<1x32xf32, #tpu.memory_space<vmem>>, %arg6: memref<16x32xf32, #tpu.memory_space<vmem>>) attributes {dimension_semantics = [#tpu.dimension_semantics<parallel>], iteration_bounds = array<i64: 1>, scalar_prefetch = 0 : i64, scratch_operands = 0 : i64, tpu.core_type = #tpu.core_type<tc>, window_params = [{transform_indices = @transform_0, window_bounds = array<i64: 16, 32>}, {pipeline_mode = #tpu.pipeline_mode<synchronous>, transform_indices = @transform_1, window_bounds = array<i64: 32, 64>}, {pipeline_mode = #tpu.pipeline_mode<synchronous>, transform_indices = @transform_2, window_bounds = array<i64: 1, 64>}, {pipeline_mode = #tpu.pipeline_mode<synchronous>, transform_indices = @transform_3, window_bounds = array<i64: 64, 32>}, {pipeline_mode = #tpu.pipeline_mode<synchronous>, transform_indices = @transform_4, window_bounds = array<i64: 1, 32>}, {transform_indices = @transform_5, window_bounds = array<i64: 16, 32>}]} {
    %c0 = arith.constant 0 : index
    %c0_0 = arith.constant 0 : index
    %0 = vector.load %arg1[%c0, %c0_0] : memref<16x32xbf16, #tpu.memory_space<vmem>>, vector<16x32xbf16>
    %c0_1 = arith.constant 0 : index
    %c0_2 = arith.constant 0 : index
    %1 = vector.load %arg2[%c0_1, %c0_2] : memref<32x64xbf16, #tpu.memory_space<vmem>>, vector<32x64xbf16>
    %cst = arith.constant dense<0.000000e+00> : vector<16x64xf32>
    %2 = tpu.matmul %0, %1, %cst {dimension_numbers = #tpu.dot_dimension_numbers<[1], [0], [0], [1], [0, 0, 1, 1], [], []>} : vector<16x32xbf16>, vector<32x64xbf16>, vector<16x64xf32> -> vector<16x64xf32>
    %c0_3 = arith.constant 0 : index
    %c0_4 = arith.constant 0 : index
    %3 = vector.load %arg3[%c0_3, %c0_4] : memref<1x64xf32, #tpu.memory_space<vmem>>, vector<1x64xf32>
    %4 = vector.broadcast %3 : vector<1x64xf32> to vector<16x64xf32>
    %5 = arith.addf %2, %4 : vector<16x64xf32>
    %6 = arith.truncf %5 : vector<16x64xf32> to vector<16x64xbf16>
    %cst_5 = arith.constant 5.000000e-01 : bf16
    %7 = vector.broadcast %cst_5 : bf16 to vector<16x64xbf16>
    %8 = arith.mulf %7, %6 : vector<16x64xbf16>
    %cst_6 = arith.constant 3.564450e-02 : bf16
    %9 = vector.broadcast %cst_6 : bf16 to vector<16x64xbf16>
    %10 = arith.mulf %9, %6 : vector<16x64xbf16>
    %11 = arith.mulf %10, %6 : vector<16x64xbf16>
    %cst_7 = arith.constant 7.968750e-01 : bf16
    %12 = vector.broadcast %cst_7 : bf16 to vector<16x64xbf16>
    %13 = arith.addf %12, %11 : vector<16x64xbf16>
    %14 = arith.mulf %6, %13 : vector<16x64xbf16>
    %15 = math.tanh %14 : vector<16x64xbf16>
    %cst_8 = arith.constant 1.000000e+00 : bf16
    %16 = vector.broadcast %cst_8 : bf16 to vector<16x64xbf16>
    %17 = arith.addf %16, %15 : vector<16x64xbf16>
    %18 = arith.mulf %8, %17 : vector<16x64xbf16>
    %c0_9 = arith.constant 0 : index
    %c0_10 = arith.constant 0 : index
    %19 = vector.load %arg4[%c0_9, %c0_10] : memref<64x32xbf16, #tpu.memory_space<vmem>>, vector<64x32xbf16>
    %cst_11 = arith.constant dense<0.000000e+00> : vector<16x32xf32>
    %20 = tpu.matmul %18, %19, %cst_11 {dimension_numbers = #tpu.dot_dimension_numbers<[1], [0], [0], [1], [0, 0, 1, 1], [], []>} : vector<16x64xbf16>, vector<64x32xbf16>, vector<16x32xf32> -> vector<16x32xf32>
    %c0_12 = arith.constant 0 : index
    %c0_13 = arith.constant 0 : index
    %21 = vector.load %arg5[%c0_12, %c0_13] : memref<1x32xf32, #tpu.memory_space<vmem>>, vector<1x32xf32>
    %22 = vector.broadcast %21 : vector<1x32xf32> to vector<16x32xf32>
    %23 = arith.addf %20, %22 : vector<16x32xf32>
    %cst_14 = arith.constant 5.000000e-01 : f32
    %24 = vector.broadcast %cst_14 : f32 to vector<16x32xf32>
    %25 = arith.mulf %24, %23 : vector<16x32xf32>
    %cst_15 = arith.constant 0.0356774069 : f32
    %26 = vector.broadcast %cst_15 : f32 to vector<16x32xf32>
    %27 = arith.mulf %26, %23 : vector<16x32xf32>
    %28 = arith.mulf %27, %23 : vector<16x32xf32>
    %cst_16 = arith.constant 0.797884583 : f32
    %29 = vector.broadcast %cst_16 : f32 to vector<16x32xf32>
    %30 = arith.addf %29, %28 : vector<16x32xf32>
    %31 = arith.mulf %23, %30 : vector<16x32xf32>
    %32 = math.tanh %31 : vector<16x32xf32>
    %cst_17 = arith.constant 1.000000e+00 : f32
    %33 = vector.broadcast %cst_17 : f32 to vector<16x32xf32>
    %34 = arith.addf %33, %32 : vector<16x32xf32>
    %35 = arith.mulf %25, %34 : vector<16x32xf32>
    %c0_18 = arith.constant 0 : index
    %c0_19 = arith.constant 0 : index
    %36 = vector.load %arg6[%c0_18, %c0_19] : memref<16x32xf32, #tpu.memory_space<vmem>>, vector<16x32xf32>
    tpu.vector_store %arg6[%c0_18, %c0_19], %35 {strides = array<i32>} : memref<16x32xf32, #tpu.memory_space<vmem>>, vector<16x32xf32>,
    return
  }
  func.func @transform_0(%arg0: i32) -> (i32, i32) {
    %c0_i32 = arith.constant 0 : i32
    %c0_i32_0 = arith.constant 0 : i32
    return %arg0, %c0_i32 : i32, i32
  }
  func.func @transform_1(%arg0: i32) -> (i32, i32) {
    %c0_i32 = arith.constant 0 : i32
    %c0_i32_0 = arith.constant 0 : i32
    %c0_i32_1 = arith.constant 0 : i32
    return %c0_i32, %c0_i32_0 : i32, i32
  }
  func.func @transform_2(%arg0: i32) -> (i32, i32) {
    %c0_i32 = arith.constant 0 : i32
    %c0_i32_0 = arith.constant 0 : i32
    %c0_i32_1 = arith.constant 0 : i32
    return %c0_i32, %c0_i32_0 : i32, i32
  }
  func.func @transform_3(%arg0: i32) -> (i32, i32) {
    %c0_i32 = arith.constant 0 : i32
    %c0_i32_0 = arith.constant 0 : i32
    %c0_i32_1 = arith.constant 0 : i32
    return %c0_i32, %c0_i32_0 : i32, i32
  }
  func.func @transform_4(%arg0: i32) -> (i32, i32) {
    %c0_i32 = arith.constant 0 : i32
    %c0_i32_0 = arith.constant 0 : i32
    %c0_i32_1 = arith.constant 0 : i32
    return %c0_i32, %c0_i32_0 : i32, i32
  }
  func.func @transform_5(%arg0: i32) -> (i32, i32) {
    %c0_i32 = arith.constant 0 : i32
    %c0_i32_0 = arith.constant 0 : i32
    return %arg0, %c0_i32 : i32, i32
  }
}

</mosaic_0001>

<llo_original>
// kernel: tpu_custom_call.1
$region0: #{tpu_custom_call.1}
  #allocation0 [shape = 'u32[]', space=smem, size = 0x4, offset = 0x4, fixed_abs, tag = 'smem constant byte address 0x4 - core index']
  #allocation1 [shape = 'u32[144,128]{1,0:T(1,128)}', space=vmem, size = 0x12000, scoped, tag = 'internal scratch']
  %s0 = inlined_call_operand.vmem [shape: bf16[16,32], index: 0, kind: input, shape index: {}]
  %s1 = inlined_call_operand.vmem [shape: bf16[32,64], index: 1, kind: input, shape index: {}]
  %s2 = inlined_call_operand.vmem [shape: f32[1,64], index: 2, kind: input, shape index: {}]
  %s3 = inlined_call_operand.vmem [shape: bf16[64,32], index: 3, kind: input, shape index: {}]
  %s4 = inlined_call_operand.vmem [shape: f32[1,32], index: 4, kind: input, shape index: {}]
  %s5 = inlined_call_operand.hbm [shape: f32[16,32], index: 5, kind: output, shape index: {}]
  %s6 = sld [smem:[#allocation0]]
  $region30: #{tpu_custom_call.1} parent=0
    _
  %s8 = ssub.s32 1, %s6
  %s9 = scalar_select 0, %s8, %s6
  $region1: #{tpu_custom_call.1} parent=0
    #allocation2 [shape = 'u8[8192]{0}', space=vmem, size = 0x2000, scoped, tag = 'output window, operand 0, single buffered']
    #allocation3 [shape = 's32[1]{0}', space=sflag, size = 0x4, scoped, tag = 'scoped memory for tpu_custom_call.1']
    %10 = vsyncpa [#allocation3], 0
    // Predicated region
    $region2: #{tpu_custom_call.1} parent=1 // pred_check
      _
    $region3: #{tpu_custom_call.1} parent=1 // pred_check_branch
      %12 = sbr.rel (0) target = $region5
    $region4: #{tpu_custom_call.1} parent=1 // pred_region
      _
    $region5: #{tpu_custom_call.1} parent=1 // pred_fallthru
      _
    // Predicated region
    $region6: #{tpu_custom_call.1} parent=1 // pred_check
      _
    $region7: #{tpu_custom_call.1} parent=1 // pred_check_branch
      %14 = sbr.rel (0) target = $region9
    $region8: #{tpu_custom_call.1} parent=1 // pred_region
      _
    $region9: #{tpu_custom_call.1} parent=1 // pred_fallthru
      _
    // Predicated region
    $region10: #{tpu_custom_call.1} parent=1 // pred_check
      _
    $region11: #{tpu_custom_call.1} parent=1 // pred_check_branch
      %16 = sbr.rel (0) target = $region13
    $region12: #{tpu_custom_call.1} parent=1 // pred_region
      _
    $region13: #{tpu_custom_call.1} parent=1 // pred_fallthru
      _
    // Predicated region
    $region14: #{tpu_custom_call.1} parent=1 // pred_check
      _
    $region15: #{tpu_custom_call.1} parent=1 // pred_check_branch
      %18 = sbr.rel (0) target = $region17
    $region16: #{tpu_custom_call.1} parent=1 // pred_region
      _
    $region17: #{tpu_custom_call.1} parent=1 // pred_fallthru
      _
    // Predicated region
    $region18: #{tpu_custom_call.1} parent=1 // pred_check
      _
    $region19: #{tpu_custom_call.1} parent=1 // pred_check_branch
      %20 = sbr.rel (0) target = $region21
    $region20: #{tpu_custom_call.1} parent=1 // pred_region
      _
    $region21: #{tpu_custom_call.1} parent=1 // pred_fallthru
      _
    %v26 = vld [vmem:[%s0] sm:$0xf]
    %v27 = vld [vmem:[%s0 + $0x4] sm:$0xf]
    %v28 = vld [vmem:[%s1] sm:$0xf]
    %v29 = vld [vmem:[%s1 + $0x4] sm:$0xf]
    %v30 = vld [vmem:[%s1 + $0x8] sm:$0xf]
    %v31 = vld [vmem:[%s1 + $0xc] sm:$0xf]
    %v32 = vld [vmem:[%s2] sm:$0x1]
    %v34 = vlaneseq
    %v35 = vshrl.u32 %v34, 7
    %v36 = vsub.s32 0, %v35
    %v37 = vrot.slane %v32, %v36
    %v41 = vunpack.c.l.b16 %v26
    %v42 = vunpack.c.l.b16 %v27
    %v43 = vpack.c.b16 %v42, %v41
    %v48 = vunpack.c.l.b16 %v28
    %v49 = vunpack.c.l.b16 %v29
    %v50 = vunpack.c.l.b16 %v30
    %v51 = vunpack.c.l.b16 %v31
    %v52 = vpack.c.b16 %v49, %v48
    %v53 = vpack.c.b16 %v51, %v50
    %vm56 = vcmask 261120
    %v58 = vsel %vm56, %v43, 0
    %60 = vmatprep.subr.bf16.mxu0 0
    %61 = vmatpush1.bf16.msra.mxu0 %v52
    %62 = vmatprep.subr.bf16.mxu0 0
    %63 = vmatpush1.bf16.msra.mxu0 %v53
    %64 = vmatprep.subr.bf16.mxu0 0
    %65 = vmatpush1.bf16.msra.mxu0 0
    %66 = vmatprep.subr.bf16.mxu0 0
    %67 = vmatpush1.bf16.msra.mxu0 0
    %68 = vmatprep.subr.bf16.mxu0 0
    %69 = vmatpush1.bf16.msra.mxu0 0
    %70 = vmatprep.subr.bf16.mxu0 0
    %71 = vmatpush1.bf16.msra.mxu0 0
    %72 = vmatprep.subr.bf16.mxu0 0
    %73 = vmatpush1.bf16.msra.mxu0 0
    %74 = vmatprep.subr.bf16.mxu0 0
    %75 = vmatpush1.bf16.msra.mxu0 0
    %76 = vmatprep.subr.bf16.mxu0 0
    %77 = vmatpush1.bf16.msra.mxu0 0
    %78 = vmatprep.subr.bf16.mxu0 0
    %79 = vmatpush1.bf16.msra.mxu0 0
    %80 = vmatprep.subr.bf16.mxu0 0
    %81 = vmatpush1.bf16.msra.mxu0 0
    %82 = vmatprep.subr.bf16.mxu0 0
    %83 = vmatpush1.bf16.msra.mxu0 0
    %84 = vmatprep.subr.bf16.mxu0 0
    %85 = vmatpush1.bf16.msra.mxu0 0
    %86 = vmatprep.subr.bf16.mxu0 0
    %87 = vmatpush1.bf16.msra.mxu0 0
    %88 = vmatprep.subr.bf16.mxu0 0
    %89 = vmatpush1.bf16.msra.mxu0 0
    %90 = vmatprep.subr.bf16.mxu0 0
    %91 = vmatpush1.bf16.msra.mxu0 0
    %92 = vmatprep.mubr.bf16.mxu0 0
    %93 = vmatmul.mubr.bf16.gmra.mrb[0].mxu0 %v58
    %v94 = vpop.f32.mrb[0].mxu0
    %v95 = vadd.f32 %v37, %v94
    %v96 = vpop.f32.mrb[0].mxu0
    %v97 = vpop.f32.mrb[0].mxu0
    %v98 = vadd.f32 %v37, %v97
    %v99 = vpop.f32.mrb[0].mxu0
    %100 = vdwg.mxu0
    %v101 = vpack.c.bf16 %v98, %v95
    %v102 = vmul.bf16 %v101, 1056980736
    %v103 = vmul.bf16 %v101, 1024605458
    %v104 = vmul.bf16 %v103, %v101
    %v105 = vadd.bf16 %v104, 1061961548
    %v106 = vmul.bf16 %v101, %v105
    %v107 = vtanh.bf16.pop %v106
    %v108 = vadd.bf16 %v107, 1065369472
    %v109 = vmul.bf16 %v102, %v108
    %v110 = vld [vmem:[%s3] sm:$0xf]
    %v111 = vld [vmem:[%s3 + $0x4] sm:$0xf]
    %v112 = vld [vmem:[%s3 + $0x8] sm:$0xf]
    %v113 = vld [vmem:[%s3 + $0xc] sm:$0xf]
    %v114 = vld [vmem:[%s3 + $0x10] sm:$0xf]
    %v115 = vld [vmem:[%s3 + $0x14] sm:$0xf]
    %v116 = vld [vmem:[%s3 + $0x18] sm:$0xf]
    %v117 = vld [vmem:[%s3 + $0x1c] sm:$0xf]
    %v118 = vld [vmem:[%s4] sm:$0x1]
    %v120 = vlaneseq
    %v121 = vshrl.u32 %v120, 7
    %v122 = vsub.s32 0, %v121
    %v123 = vrot.slane %v118, %v122
    %v133 = vunpack.c.l.b16 %v110
    %v134 = vunpack.c.l.b16 %v111
    %v135 = vunpack.c.l.b16 %v112
    %v136 = vunpack.c.l.b16 %v113
    %v137 = vunpack.c.l.b16 %v114
    %v138 = vunpack.c.l.b16 %v115
    %v139 = vunpack.c.l.b16 %v116
    %v140 = vunpack.c.l.b16 %v117
    %v141 = vpack.c.b16 %v134, %v133
    %v142 = vpack.c.b16 %v136, %v135
    %v143 = vpack.c.b16 %v138, %v137
    %v144 = vpack.c.b16 %v140, %v139
    %vm149 = vcmask 523264
    %v151 = vsel %vm149, %v109, 0
    %153 = vmatprep.subr.bf16.mxu0 0
    %154 = vmatpush1.bf16.msra.mxu0 %v141
    %155 = vmatprep.subr.bf16.mxu0 0
    %156 = vmatpush1.bf16.msra.mxu0 %v142
    %157 = vmatprep.subr.bf16.mxu0 0
    %158 = vmatpush1.bf16.msra.mxu0 %v143
    %159 = vmatprep.subr.bf16.mxu0 0
    %160 = vmatpush1.bf16.msra.mxu0 %v144
    %161 = vmatprep.subr.bf16.mxu0 0
    %162 = vmatpush1.bf16.msra.mxu0 0
    %163 = vmatprep.subr.bf16.mxu0 0
    %164 = vmatpush1.bf16.msra.mxu0 0
    %165 = vmatprep.subr.bf16.mxu0 0
    %166 = vmatpush1.bf16.msra.mxu0 0
    %167 = vmatprep.subr.bf16.mxu0 0
    %168 = vmatpush1.bf16.msra.mxu0 0
    %169 = vmatprep.subr.bf16.mxu0 0
    %170 = vmatpush1.bf16.msra.mxu0 0
    %171 = vmatprep.subr.bf16.mxu0 0
    %172 = vmatpush1.bf16.msra.mxu0 0
    %173 = vmatprep.subr.bf16.mxu0 0
    %174 = vmatpush1.bf16.msra.mxu0 0
    %175 = vmatprep.subr.bf16.mxu0 0
    %176 = vmatpush1.bf16.msra.mxu0 0
    %177 = vmatprep.subr.bf16.mxu0 0
    %178 = vmatpush1.bf16.msra.mxu0 0
    %179 = vmatprep.subr.bf16.mxu0 0
    %180 = vmatpush1.bf16.msra.mxu0 0
    %181 = vmatprep.subr.bf16.mxu0 0
    %182 = vmatpush1.bf16.msra.mxu0 0
    %183 = vmatprep.subr.bf16.mxu0 0
    %184 = vmatpush1.bf16.msra.mxu0 0
    %185 = vmatprep.mubr.bf16.mxu0 0
    %186 = vmatmul.mubr.bf16.gmra.mrb[0].mxu0 %v151
    %v187 = vpop.f32.mrb[0].mxu0
    %v188 = vadd.f32 %v123, %v187
    %v189 = vpop.f32.mrb[0].mxu0
    %v190 = vpop.f32.mrb[0].mxu0
    %v191 = vadd.f32 %v123, %v190
    %v192 = vpop.f32.mrb[0].mxu0
    %193 = vdwg.mxu0
    %v194 = vmul.f32 %v188, 0.5
    %v195 = vmul.f32 %v191, 0.5
    %v196 = vmul.f32 %v188, 0.035677407
    %v197 = vmul.f32 %v191, 0.035677407
    %v198 = vmul.f32 %v196, %v188
    %v199 = vmul.f32 %v197, %v191
    %v200 = vadd.f32 %v198, 0.7978846
    %v201 = vadd.f32 %v199, 0.7978846
    %v202 = vmul.f32 %v188, %v200
    %v203 = vmul.f32 %v191, %v201
    %v204 = vtanh.pop %v202
    %v205 = vtanh.pop %v203
    %v206 = vadd.f32 %v204, 1.0
    %v207 = vadd.f32 %v205, 1.0
    %v208 = vmul.f32 %v194, %v206
    %v209 = vmul.f32 %v195, %v207
    %210 = vst.msk [vmem:[#allocation2] sm:$0xff] %vm56, %v208
    %211 = vst.msk [vmem:[#allocation2 + $0x8] sm:$0xff] %vm56, %v209
    // Predicated region
    $region22: #{tpu_custom_call.1} parent=1 // pred_check
      _
    $region23: #{tpu_custom_call.1} parent=1 // pred_check_branch
      %213 = sbr.rel (0) target = $region25
    $region24: #{tpu_custom_call.1} parent=1 // pred_region
      %s215 = ssub.s32 256, 256
      %216 = vsyncadd [#allocation3], %s215
      %s217 = sshll.u32 [#allocation2], 4
      %s218 = int_to_ptr.vmem [resolvable:$true] %s217
      %223 = dma.vmem_to_hbm [thread:$0]  %s218, 256, %s5, [#allocation3], 128, 128, 8
    $region25: #{tpu_custom_call.1} parent=1 // pred_fallthru
      _
    // Predicated region
    $region26: #{tpu_custom_call.1} parent=1 // pred_check
      _
    $region27: #{tpu_custom_call.1} parent=1 // pred_check_branch
      %225 = sbr.rel (0) target = $region29
    $region28: #{tpu_custom_call.1} parent=1 // pred_region
      %226 = dma.done [#allocation3], 256
    $region29: #{tpu_custom_call.1} parent=1 // pred_fallthru
      _
    %227 = vsyncpa [#allocation3], 1

// kernel: tpu_custom_call.1
$region0: #{tpu_custom_call.1}
  #allocation0 [shape = 'u32[]', space=smem, size = 0x4, offset = 0x4, fixed_abs, tag = 'smem constant byte address 0x4 - core index']
  #allocation1 [shape = 'u32[144,128]{1,0:T(1,128)}', space=vmem, size = 0x12000, scoped, tag = 'internal scratch']
  %s0 = inlined_call_operand.vmem [shape: bf16[16,32], index: 0, kind: input, shape index: {}]
  %s1 = inlined_call_operand.vmem [shape: bf16[32,64], index: 1, kind: input, shape index: {}]
  %s2 = inlined_call_operand.vmem [shape: f32[1,64], index: 2, kind: input, shape index: {}]
  %s3 = inlined_call_operand.vmem [shape: bf16[64,32], index: 3, kind: input, shape index: {}]
  %s4 = inlined_call_operand.vmem [shape: f32[1,32], index: 4, kind: input, shape index: {}]
  %s5 = inlined_call_operand.hbm [shape: f32[16,32], index: 5, kind: output, shape index: {}]
  %s6 = sld [smem:[#allocation0]]
  $region30: #{tpu_custom_call.1} parent=0
    _
  %s8 = ssub.s32 1, %s6
  %s9 = scalar_select 0, %s8, %s6
  $region1: #{tpu_custom_call.1} parent=0
    #allocation2 [shape = 'u8[8192]{0}', space=vmem, size = 0x2000, scoped, tag = 'output window, operand 0, single buffered']
    #allocation3 [shape = 's32[1]{0}', space=sflag, size = 0x4, scoped, tag = 'scoped memory for tpu_custom_call.1']
    %10 = vsyncpa [#allocation3], 0
    // Predicated region
    $region2: #{tpu_custom_call.1} parent=1 // pred_check
      _
    $region3: #{tpu_custom_call.1} parent=1 // pred_check_branch
      %12 = sbr.rel (0) target = $region5
    $region4: #{tpu_custom_call.1} parent=1 // pred_region
      _
    $region5: #{tpu_custom_call.1} parent=1 // pred_fallthru
      _
    // Predicated region
    $region6: #{tpu_custom_call.1} parent=1 // pred_check
      _
    $region7: #{tpu_custom_call.1} parent=1 // pred_check_branch
      %14 = sbr.rel (0) target = $region9
    $region8: #{tpu_custom_call.1} parent=1 // pred_region
      _
    $region9: #{tpu_custom_call.1} parent=1 // pred_fallthru
      _
    // Predicated region
    $region10: #{tpu_custom_call.1} parent=1 // pred_check
      _
    $region11: #{tpu_custom_call.1} parent=1 // pred_check_branch
      %16 = sbr.rel (0) target = $region13
    $region12: #{tpu_custom_call.1} parent=1 // pred_region
      _
    $region13: #{tpu_custom_call.1} parent=1 // pred_fallthru
      _
    // Predicated region
    $region14: #{tpu_custom_call.1} parent=1 // pred_check
      _
    $region15: #{tpu_custom_call.1} parent=1 // pred_check_branch
      %18 = sbr.rel (0) target = $region17
    $region16: #{tpu_custom_call.1} parent=1 // pred_region
      _
    $region17: #{tpu_custom_call.1} parent=1 // pred_fallthru
      _
    // Predicated region
    $region18: #{tpu_custom_call.1} parent=1 // pred_check
      _
    $region19: #{tpu_custom_call.1} parent=1 // pred_check_branch
      %20 = sbr.rel (0) target = $region21
    $region20: #{tpu_custom_call.1} parent=1 // pred_region
      _
    $region21: #{tpu_custom_call.1} parent=1 // pred_fallthru
      _
    %v26 = vld [vmem:[%s0] sm:$0xf]
    %v27 = vld [vmem:[%s0 + $0x4] sm:$0xf]
    %v28 = vld [vmem:[%s1] sm:$0xf]
    %v29 = vld [vmem:[%s1 + $0x4] sm:$0xf]
    %v30 = vld [vmem:[%s1 + $0x8] sm:$0xf]
    %v31 = vld [vmem:[%s1 + $0xc] sm:$0xf]
    %v32 = vld [vmem:[%s2] sm:$0x1]
    %v34 = vlaneseq
    %v35 = vshrl.u32 %v34, 7
    %v36 = vsub.s32 0, %v35
    %v37 = vrot.slane %v32, %v36
    %v41 = vunpack.c.l.b16 %v26
    %v42 = vunpack.c.l.b16 %v27
    %v43 = vpack.c.b16 %v42, %v41
    %v48 = vunpack.c.l.b16 %v28
    %v49 = vunpack.c.l.b16 %v29
    %v50 = vunpack.c.l.b16 %v30
    %v51 = vunpack.c.l.b16 %v31
    %v52 = vpack.c.b16 %v49, %v48
    %v53 = vpack.c.b16 %v51, %v50
    %vm56 = vcmask 261120
    %v58 = vsel %vm56, %v43, 0
    %60 = vmatprep.subr.bf16.mxu0 0
    %61 = vmatpush1.bf16.msra.mxu0 %v52
    %62 = vmatprep.subr.bf16.mxu0 0
    %63 = vmatpush1.bf16.msra.mxu0 %v53
    %64 = vmatprep.subr.bf16.mxu0 0
    %65 = vmatpush1.bf16.msra.mxu0 0
    %66 = vmatprep.subr.bf16.mxu0 0
    %67 = vmatpush1.bf16.msra.mxu0 0
    %68 = vmatprep.subr.bf16.mxu0 0
    %69 = vmatpush1.bf16.msra.mxu0 0
    %70 = vmatprep.subr.bf16.mxu0 0
    %71 = vmatpush1.bf16.msra.mxu0 0
    %72 = vmatprep.subr.bf16.mxu0 0
    %73 = vmatpush1.bf16.msra.mxu0 0
    %74 = vmatprep.subr.bf16.mxu0 0
    %75 = vmatpush1.bf16.msra.mxu0 0
    %76 = vmatprep.subr.bf16.mxu0 0
    %77 = vmatpush1.bf16.msra.mxu0 0
    %78 = vmatprep.subr.bf16.mxu0 0
    %79 = vmatpush1.bf16.msra.mxu0 0
    %80 = vmatprep.subr.bf16.mxu0 0
    %81 = vmatpush1.bf16.msra.mxu0 0
    %82 = vmatprep.subr.bf16.mxu0 0
    %83 = vmatpush1.bf16.msra.mxu0 0
    %84 = vmatprep.subr.bf16.mxu0 0
    %85 = vmatpush1.bf16.msra.mxu0 0
    %86 = vmatprep.subr.bf16.mxu0 0
    %87 = vmatpush1.bf16.msra.mxu0 0
    %88 = vmatprep.subr.bf16.mxu0 0
    %89 = vmatpush1.bf16.msra.mxu0 0
    %90 = vmatprep.subr.bf16.mxu0 0
    %91 = vmatpush1.bf16.msra.mxu0 0
    %92 = vmatprep.mubr.bf16.mxu0 0
    %93 = vmatmul.mubr.bf16.gmra.mrb[0].mxu0 %v58
    %v94 = vpop.f32.mrb[0].mxu0
    %v95 = vadd.f32 %v37, %v94
    %v96 = vpop.f32.mrb[0].mxu0
    %v97 = vpop.f32.mrb[0].mxu0
    %v98 = vadd.f32 %v37, %v97
    %v99 = vpop.f32.mrb[0].mxu0
    %100 = vdwg.mxu0
    %v101 = vpack.c.bf16 %v98, %v95
    %v102 = vmul.bf16 %v101, 1056980736
    %v103 = vmul.bf16 %v101, 1024605458
    %v104 = vmul.bf16 %v103, %v101
    %v105 = vadd.bf16 %v104, 1061961548
    %v106 = vmul.bf16 %v101, %v105
    %v107 = vtanh.bf16.pop %v106
    %v108 = vadd.bf16 %v107, 1065369472
    %v109 = vmul.bf16 %v102, %v108
    %v110 = vld [vmem:[%s3] sm:$0xf]
    %v111 = vld [vmem:[%s3 + $0x4] sm:$0xf]
    %v112 = vld [vmem:[%s3 + $0x8] sm:$0xf]
    %v113 = vld [vmem:[%s3 + $0xc] sm:$0xf]
    %v114 = vld [vmem:[%s3 + $0x10] sm:$0xf]
    %v115 = vld [vmem:[%s3 + $0x14] sm:$0xf]
    %v116 = vld [vmem:[%s3 + $0x18] sm:$0xf]
    %v117 = vld [vmem:[%s3 + $0x1c] sm:$0xf]
    %v118 = vld [vmem:[%s4] sm:$0x1]
    %v120 = vlaneseq
    %v121 = vshrl.u32 %v120, 7
    %v122 = vsub.s32 0, %v121
    %v123 = vrot.slane %v118, %v122
    %v133 = vunpack.c.l.b16 %v110
    %v134 = vunpack.c.l.b16 %v111
    %v135 = vunpack.c.l.b16 %v112
    %v136 = vunpack.c.l.b16 %v113
    %v137 = vunpack.c.l.b16 %v114
    %v138 = vunpack.c.l.b16 %v115
    %v139 = vunpack.c.l.b16 %v116
    %v140 = vunpack.c.l.b16 %v117
    %v141 = vpack.c.b16 %v134, %v133
    %v142 = vpack.c.b16 %v136, %v135
    %v143 = vpack.c.b16 %v138, %v137
    %v144 = vpack.c.b16 %v140, %v139
    %vm149 = vcmask 523264
    %v151 = vsel %vm149, %v109, 0
    %153 = vmatprep.subr.bf16.mxu0 0
    %154 = vmatpush1.bf16.msra.mxu0 %v141
    %155 = vmatprep.subr.bf16.mxu0 0
    %156 = vmatpush1.bf16.msra.mxu0 %v142
    %157 = vmatprep.subr.bf16.mxu0 0
    %158 = vmatpush1.bf16.msra.mxu0 %v143
    %159 = vmatprep.subr.bf16.mxu0 0
    %160 = vmatpush1.bf16.msra.mxu0 %v144
    %161 = vmatprep.subr.bf16.mxu0 0
    %162 = vmatpush1.bf16.msra.mxu0 0
    %163 = vmatprep.subr.bf16.mxu0 0
    %164 = vmatpush1.bf16.msra.mxu0 0
    %165 = vmatprep.subr.bf16.mxu0 0
    %166 = vmatpush1.bf16.msra.mxu0 0
    %167 = vmatprep.subr.bf16.mxu0 0
    %168 = vmatpush1.bf16.msra.mxu0 0
    %169 = vmatprep.subr.bf16.mxu0 0
    %170 = vmatpush1.bf16.msra.mxu0 0
    %171 = vmatprep.subr.bf16.mxu0 0
    %172 = vmatpush1.bf16.msra.mxu0 0
    %173 = vmatprep.subr.bf16.mxu0 0
    %174 = vmatpush1.bf16.msra.mxu0 0
    %175 = vmatprep.subr.bf16.mxu0 0
    %176 = vmatpush1.bf16.msra.mxu0 0
    %177 = vmatprep.subr.bf16.mxu0 0
    %178 = vmatpush1.bf16.msra.mxu0 0
    %179 = vmatprep.subr.bf16.mxu0 0
    %180 = vmatpush1.bf16.msra.mxu0 0
    %181 = vmatprep.subr.bf16.mxu0 0
    %182 = vmatpush1.bf16.msra.mxu0 0
    %183 = vmatprep.subr.bf16.mxu0 0
    %184 = vmatpush1.bf16.msra.mxu0 0
    %185 = vmatprep.mubr.bf16.mxu0 0
    %186 = vmatmul.mubr.bf16.gmra.mrb[0].mxu0 %v151
    %v187 = vpop.f32.mrb[0].mxu0
    %v188 = vadd.f32 %v123, %v187
    %v189 = vpop.f32.mrb[0].mxu0
    %v190 = vpop.f32.mrb[0].mxu0
    %v191 = vadd.f32 %v123, %v190
    %v192 = vpop.f32.mrb[0].mxu0
    %193 = vdwg.mxu0
    %v194 = vmul.f32 %v188, 0.5
    %v195 = vmul.f32 %v191, 0.5
    %v196 = vmul.f32 %v188, 0.035677407
    %v197 = vmul.f32 %v191, 0.035677407
    %v198 = vmul.f32 %v196, %v188
    %v199 = vmul.f32 %v197, %v191
    %v200 = vadd.f32 %v198, 0.7978846
    %v201 = vadd.f32 %v199, 0.7978846
    %v202 = vmul.f32 %v188, %v200
    %v203 = vmul.f32 %v191, %v201
    %v204 = vtanh.pop %v202
    %v205 = vtanh.pop %v203
    %v206 = vadd.f32 %v204, 1.0
    %v207 = vadd.f32 %v205, 1.0
    %v208 = vmul.f32 %v194, %v206
    %v209 = vmul.f32 %v195, %v207
    %210 = vst.msk [vmem:[#allocation2] sm:$0xff] %vm56, %v208
    %211 = vst.msk [vmem:[#allocation2 + $0x8] sm:$0xff] %vm56, %v209
    // Predicated region
    $region22: #{tpu_custom_call.1} parent=1 // pred_check
      _
    $region23: #{tpu_custom_call.1} parent=1 // pred_check_branch
      %213 = sbr.rel (0) target = $region25
    $region24: #{tpu_custom_call.1} parent=1 // pred_region
      %s215 = ssub.s32 256, 256
      %216 = vsyncadd [#allocation3], %s215
      %s217 = sshll.u32 [#allocation2], 4
      %s218 = int_to_ptr.vmem [resolvable:$true] %s217
      %223 = dma.vmem_to_hbm [thread:$0]  %s218, 256, %s5, [#allocation3], 128, 128, 8
    $region25: #{tpu_custom_call.1} parent=1 // pred_fallthru
      _
    // Predicated region
    $region26: #{tpu_custom_call.1} parent=1 // pred_check
      _
    $region27: #{tpu_custom_call.1} parent=1 // pred_check_branch
      %225 = sbr.rel (0) target = $region29
    $region28: #{tpu_custom_call.1} parent=1 // pred_region
      %226 = dma.done [#allocation3], 256
    $region29: #{tpu_custom_call.1} parent=1 // pred_fallthru
      _
    %227 = vsyncpa [#allocation3], 1

</llo_original>
